<compile_context>
chip_gen: v6e
topology: v6e:2x2x1
jax: 0.10.0
libtpu: 0.0.40
codegen_flags: <defaults>
</compile_context>

<pallas_src>
import functools

import jax
import jax.numpy as jnp
from jax.experimental import pallas as pl
from jax.experimental.pallas import tpu as pltpu


def _interval_mse_kernel(zl_ref, zu_ref, y_ref, out_ref, *, tiles_per_core,
                         n_rows):
    """One (tile_b, D) tile -> per-core running sum of per-row max loss."""
    c = pl.program_id(0)          # core / outer (parallel) axis
    t = pl.program_id(1)          # tile within core (arbitrary / reduction axis)

    # Output block index depends only on c -> block stays resident across t.
    @pl.when(t == 0)
    def _init():
        out_ref[...] = jnp.zeros_like(out_ref)

    y = y_ref[...].astype(jnp.float32)
    dl = y - zl_ref[...].astype(jnp.float32)
    du = y - zu_ref[...].astype(jnp.float32)

    lower = jnp.sum(dl * dl, axis=-1, keepdims=True)     # (tile_b, 1)
    upper = jnp.sum(du * du, axis=-1, keepdims=True)     # (tile_b, 1)
    max_loss = jnp.maximum(lower, upper)                 # (tile_b, 1)

    # Mask rows past the true batch size (edge tiles / fully-OOB extra tiles).
    tile_rows = max_loss.shape[0]
    row_start = (c * tiles_per_core + t) * tile_rows
    row_ids = row_start + jax.lax.broadcasted_iota(jnp.int32, (tile_rows, 1), 0)
    masked = jnp.where(row_ids < n_rows, max_loss, 0.0)

    tile_sum = jnp.sum(masked, axis=0, keepdims=True)    # (1, 1)
    out_ref[...] = out_ref[...] + tile_sum               # broadcast -> (1,8,128)


def _round_up(x, m):
    return ((x + m - 1) // m) * m


def _vmem_capacity_bytes():
    try:
        return int(pltpu.get_tpu_info().vmem_capacity_bytes)
    except Exception:
        return 64 << 20  # conservative default (v7x per-TensorCore VMEM)


def _sublane_multiple(itemsize):
    # Packed sublane tile: 8 rows f32, 16 bf16/f16, 32 int8/fp8.
    return max(8, 32 // max(int(itemsize), 1))


def _choose_tile_b(d, itemsize, sub, capacity):
    d_pad = _round_up(d, 128)
    # Bytes per tile row in VMEM: 3 double-buffered input streams plus f32
    # upcast temporaries for the diffs/squares.
    per_row = 3 * 2 * d_pad * itemsize + 3 * d_pad * 4
    budget = min(capacity // 4, 12 << 20)          # streaming saturates early
    rows_by_budget = budget // per_row
    # Cap each individual input block at ~2 MiB: 512-1024 rows already hit
    # ~85% of the HBM roofline; bigger blocks just add VMEM pressure.
    rows_by_block = (2 << 20) // (d_pad * itemsize)
    tile_b = min(rows_by_budget, rows_by_block)
    return max(sub, (tile_b // sub) * sub)


def interval_mse_loss(z_l, z_u, y, *, tile_b=None, num_cores=2):
    """Interval MSE loss. Inputs: (..., D) arrays. Returns a float32 scalar."""
    assert z_l.shape == z_u.shape == y.shape
    d = int(z_l.shape[-1])
    n_rows = 1
    for s in z_l.shape[:-1]:
        n_rows *= int(s)
    n_rows = max(n_rows, 1)

    zl2 = z_l.reshape(n_rows, d)
    zu2 = z_u.reshape(n_rows, d)
    y2 = y.reshape(n_rows, d)

    itemsize = max(jnp.dtype(a.dtype).itemsize for a in (zl2, zu2, y2))
    sub = _sublane_multiple(itemsize)
    capacity = _vmem_capacity_bytes()
    d_pad = _round_up(d, 128)

    if tile_b is None:
        tile_b = _choose_tile_b(d, itemsize, sub, capacity)
    else:
        tile_b = max(sub, _round_up(int(tile_b), sub))
    if tile_b >= n_rows:
        # Whole problem in one full-extent block (always layout-legal).
        tile_b = n_rows

    n_tiles = pl.cdiv(n_rows, tile_b)
    num_cores = max(1, min(int(num_cores), n_tiles))
    tiles_per_core = pl.cdiv(n_tiles, num_cores)

    # VMEM budget with padded footprint (lane/sublane padding + f32 temps).
    tile_rows_pad = _round_up(tile_b, sub)
    working = 3 * 2 * tile_rows_pad * d_pad * itemsize   # double-buffered inputs
    working += 3 * tile_rows_pad * d_pad * 4             # f32 upcast temporaries
    working += 2 * 8 * 128 * 4                           # double-buffered output
    vmem_limit = int(min(capacity, max(32 << 20, working + (8 << 20))))

    max_block = n_tiles - 1

    def in_index_map(c, t):
        blk = c * tiles_per_core + t
        # Extra tiles beyond the array are clamped to the last valid block and
        # fully masked in-kernel (row_ids >= n_rows).
        return (jnp.minimum(blk, max_block), 0)

    in_spec = pl.BlockSpec((tile_b, d), in_index_map)
    out_spec = pl.BlockSpec((1, 8, 128), lambda c, t: (c, 0, 0))

    cost = pl.CostEstimate(
        flops=6 * n_rows * d + 2 * n_rows,
        transcendentals=0,
        bytes_accessed=3 * n_rows * d * itemsize + num_cores * 8 * 128 * 4,
    )

    kernel = functools.partial(
        _interval_mse_kernel,
        tiles_per_core=tiles_per_core,
        n_rows=n_rows,
    )

    partials = pl.pallas_call(
        kernel,
        out_shape=jax.ShapeDtypeStruct((num_cores, 8, 128), jnp.float32),
        grid_spec=pltpu.PrefetchScalarGridSpec(
            num_scalar_prefetch=0,
            grid=(num_cores, tiles_per_core),
            in_specs=[in_spec, in_spec, in_spec],
            out_specs=out_spec,
        ),
        compiler_params=pltpu.CompilerParams(
            dimension_semantics=("parallel", "arbitrary"),
            vmem_limit_bytes=vmem_limit,
        ),
        cost_estimate=cost,
    )(zl2, zu2, y2)

    # Each core's block holds its partial sum replicated; take one element per
    # core, sum across cores, divide by N (mean).
    total = jnp.sum(partials[:, 0, 0])
    return total / jnp.float32(n_rows)


def interval_mse_loss_ref(z_l, z_u, y):
    yf = y.astype(jnp.float32)
    lower = jnp.sum((yf - z_l.astype(jnp.float32)) ** 2, axis=-1)
    upper = jnp.sum((yf - z_u.astype(jnp.float32)) ** 2, axis=-1)
    return jnp.mean(jnp.maximum(lower, upper))


if __name__ == "__main__":
    key = jax.random.PRNGKey(0)
    k1, k2, k3 = jax.random.split(key, 3)

    # Case 1: small f32 problem, auto tile (single full-extent block).
    B, D = 8, 32
    x0 = jax.random.normal(k1, (B, D), dtype=jnp.float32)        # midpoint
    eps = jnp.abs(jax.random.normal(k2, (B, D), dtype=jnp.float32)) * 0.1
    y = jax.random.normal(k3, (B, D), dtype=jnp.float32)          # ground truth
    z_l = x0 - eps   # lower bound of target network output
    z_u = x0 + eps   # upper bound of target network output

    loss = jax.block_until_ready(interval_mse_loss(z_l, z_u, y))
    ref = interval_mse_loss_ref(z_l, z_u, y)
    assert jnp.allclose(loss, ref, rtol=1e-5, atol=1e-5), (loss, ref)

    # Case 2: non-multiple batch, bf16 inputs, forced small tile -> exercises
    # in-kernel tail masking, the (num_cores, tiles_per_core) grid, clamped
    # block indices for fully-out-of-range tiles, and per-core partial sums.
    k4, k5, k6 = jax.random.split(jax.random.PRNGKey(1), 3)
    B2, D2 = 100, 32
    x0b = jax.random.normal(k4, (B2, D2), dtype=jnp.float32).astype(jnp.bfloat16)
    epsb = (jnp.abs(jax.random.normal(k5, (B2, D2), dtype=jnp.float32)) * 0.1
            ).astype(jnp.bfloat16)
    yb = jax.random.normal(k6, (B2, D2), dtype=jnp.float32).astype(jnp.bfloat16)
    zlb = x0b - epsb
    zub = x0b + epsb

    loss2 = jax.block_until_ready(interval_mse_loss(zlb, zub, yb, tile_b=16))
    ref2 = interval_mse_loss_ref(zlb, zub, yb)
    assert jnp.allclose(loss2, ref2, rtol=1e-4, atol=1e-4), (loss2, ref2)

    # Case 3: 3-D leading dims, row count not a sublane multiple -> exercises
    # the reshape path and the full-extent (non-multiple-of-8) block.
    k7, k8, k9 = jax.random.split(jax.random.PRNGKey(2), 3)
    x0c = jax.random.normal(k7, (2, 13, 32), dtype=jnp.float32)
    epsc = jnp.abs(jax.random.normal(k8, (2, 13, 32), dtype=jnp.float32)) * 0.05
    yc = jax.random.normal(k9, (2, 13, 32), dtype=jnp.float32)
    loss3 = jax.block_until_ready(interval_mse_loss(x0c - epsc, x0c + epsc, yc))
    ref3 = interval_mse_loss_ref(x0c - epsc, x0c + epsc, yc)
    assert jnp.allclose(loss3, ref3, rtol=1e-5, atol=1e-5), (loss3, ref3)

    # TODO(synk): the PyTorch module's `worst_case_error` property is a
    # host-side Python attribute set from loss.item(); here it is float(loss).
    print("KERNEL_OK")
</pallas_src>

<mosaic_0001>
module attributes {stable_mosaic.version = 11 : i64} {
  func.func @_interval_mse_kernel(%arg0: i32, %arg1: i32, %arg2: memref<8x32xf32, #tpu.memory_space<vmem>>, %arg3: memref<8x32xf32, #tpu.memory_space<vmem>>, %arg4: memref<8x32xf32, #tpu.memory_space<vmem>>, %arg5: memref<1x8x128xf32, #tpu.memory_space<vmem>>) attributes {dimension_semantics = [#tpu.dimension_semantics<parallel>, #tpu.dimension_semantics<arbitrary>], iteration_bounds = array<i64: 1, 1>, scalar_prefetch = 0 : i64, scratch_operands = 0 : i64, tpu.core_type = #tpu.core_type<tc>, window_params = [{transform_indices = @transform_0, window_bounds = array<i64: 8, 32>}, {transform_indices = @transform_1, window_bounds = array<i64: 8, 32>}, {transform_indices = @transform_2, window_bounds = array<i64: 8, 32>}, {transform_indices = @transform_3, window_bounds = array<i64: 1, 8, 128>}]} {
    %c0_i32 = arith.constant 0 : i32
    %0 = arith.cmpi eq, %arg1, %c0_i32 : i32
    %1 = arith.extui %0 : i1 to i32
    %c0_i32_0 = arith.constant 0 : i32
    %2 = arith.cmpi ne, %1, %c0_i32_0 : i32
    scf.if %2 {
      %cst_16 = arith.constant 0.000000e+00 : f32
      %32 = vector.broadcast %cst_16 : f32 to vector<1x8x128xf32>
      %c0_17 = arith.constant 0 : index
      %c0_18 = arith.constant 0 : index
      %c0_19 = arith.constant 0 : index
      %33 = vector.load %arg5[%c0_17, %c0_18, %c0_19] : memref<1x8x128xf32, #tpu.memory_space<vmem>>, vector<1x8x128xf32>
      tpu.vector_store %arg5[%c0_17, %c0_18, %c0_19], %32 {strides = array<i32>} : memref<1x8x128xf32, #tpu.memory_space<vmem>>, vector<1x8x128xf32>,
    } else {
    }
    %c0 = arith.constant 0 : index
    %c0_1 = arith.constant 0 : index
    %3 = vector.load %arg4[%c0, %c0_1] : memref<8x32xf32, #tpu.memory_space<vmem>>, vector<8x32xf32>
    %c0_2 = arith.constant 0 : index
    %c0_3 = arith.constant 0 : index
    %4 = vector.load %arg2[%c0_2, %c0_3] : memref<8x32xf32, #tpu.memory_space<vmem>>, vector<8x32xf32>
    %5 = arith.subf %3, %4 : vector<8x32xf32>
    %c0_4 = arith.constant 0 : index
    %c0_5 = arith.constant 0 : index
    %6 = vector.load %arg3[%c0_4, %c0_5] : memref<8x32xf32, #tpu.memory_space<vmem>>, vector<8x32xf32>
    %7 = arith.subf %3, %6 : vector<8x32xf32>
    %8 = arith.mulf %5, %5 : vector<8x32xf32>
    %cst = arith.constant dense<0.000000e+00> : vector<8xf32>
    %9 = vector.multi_reduction <add>, %8, %cst [1] : vector<8x32xf32> to vector<8xf32>
    %10 = vector.shape_cast %9 : vector<8xf32> to vector<8x1xf32>
    %11 = arith.mulf %7, %7 : vector<8x32xf32>
    %cst_6 = arith.constant dense<0.000000e+00> : vector<8xf32>
    %12 = vector.multi_reduction <add>, %11, %cst_6 [1] : vector<8x32xf32> to vector<8xf32>
    %13 = vector.shape_cast %12 : vector<8xf32> to vector<8x1xf32>
    %14 = arith.maximumf %10, %13 : vector<8x1xf32>
    %c1_i32 = arith.constant 1 : i32
    %15 = arith.muli %arg0, %c1_i32 : i32
    %16 = arith.addi %15, %arg1 : i32
    %c8_i32 = arith.constant 8 : i32
    %17 = arith.muli %16, %c8_i32 : i32
    %18 = tpu.iota {dimensions = array<i32: 0>} : vector<8x1xi32>
    %19 = vector.broadcast %17 : i32 to vector<8x1xi32>
    %20 = arith.addi %19, %18 : vector<8x1xi32>
    %c8_i32_7 = arith.constant 8 : i32
    %21 = vector.broadcast %c8_i32_7 : i32 to vector<8x1xi32>
    %22 = arith.cmpi slt, %20, %21 : vector<8x1xi32>
    %cst_8 = arith.constant 0.000000e+00 : f32
    %23 = vector.broadcast %cst_8 : f32 to vector<8x1xf32>
    %24 = arith.select %22, %14, %23 : vector<8x1xi1>, vector<8x1xf32>
    %cst_9 = arith.constant dense<0.000000e+00> : vector<1xf32>
    %25 = vector.multi_reduction <add>, %24, %cst_9 [0] : vector<8x1xf32> to vector<1xf32>
    %26 = vector.shape_cast %25 : vector<1xf32> to vector<1x1xf32>
    %c0_10 = arith.constant 0 : index
    %c0_11 = arith.constant 0 : index
    %c0_12 = arith.constant 0 : index
    %27 = vector.load %arg5[%c0_10, %c0_11, %c0_12] : memref<1x8x128xf32, #tpu.memory_space<vmem>>, vector<1x8x128xf32>
    %28 = vector.shape_cast %26 : vector<1x1xf32> to vector<1x1x1xf32>
    %29 = vector.broadcast %28 : vector<1x1x1xf32> to vector<1x8x128xf32>
    %30 = arith.addf %27, %29 : vector<1x8x128xf32>
    %c0_13 = arith.constant 0 : index
    %c0_14 = arith.constant 0 : index
    %c0_15 = arith.constant 0 : index
    %31 = vector.load %arg5[%c0_13, %c0_14, %c0_15] : memref<1x8x128xf32, #tpu.memory_space<vmem>>, vector<1x8x128xf32>
    tpu.vector_store %arg5[%c0_13, %c0_14, %c0_15], %30 {strides = array<i32>} : memref<1x8x128xf32, #tpu.memory_space<vmem>>, vector<1x8x128xf32>,
    return
  }
  func.func @transform_0(%arg0: i32, %arg1: i32) -> (i32, i32) {
    %c1_i32 = arith.constant 1 : i32
    %0 = arith.muli %arg0, %c1_i32 : i32
    %1 = arith.addi %0, %arg1 : i32
    %c0_i32 = arith.constant 0 : i32
    %2 = arith.minsi %1, %c0_i32 : i32
    %c0_i32_0 = arith.constant 0 : i32
    %c0_i32_1 = arith.constant 0 : i32
    return %2, %c0_i32_0 : i32, i32
  }
  func.func @transform_1(%arg0: i32, %arg1: i32) -> (i32, i32) {
    %c1_i32 = arith.constant 1 : i32
    %0 = arith.muli %arg0, %c1_i32 : i32
    %1 = arith.addi %0, %arg1 : i32
    %c0_i32 = arith.constant 0 : i32
    %2 = arith.minsi %1, %c0_i32 : i32
    %c0_i32_0 = arith.constant 0 : i32
    %c0_i32_1 = arith.constant 0 : i32
    return %2, %c0_i32_0 : i32, i32
  }
  func.func @transform_2(%arg0: i32, %arg1: i32) -> (i32, i32) {
    %c1_i32 = arith.constant 1 : i32
    %0 = arith.muli %arg0, %c1_i32 : i32
    %1 = arith.addi %0, %arg1 : i32
    %c0_i32 = arith.constant 0 : i32
    %2 = arith.minsi %1, %c0_i32 : i32
    %c0_i32_0 = arith.constant 0 : i32
    %c0_i32_1 = arith.constant 0 : i32
    return %2, %c0_i32_0 : i32, i32
  }
  func.func @transform_3(%arg0: i32, %arg1: i32) -> (i32, i32, i32) {
    %c0_i32 = arith.constant 0 : i32
    %c0_i32_0 = arith.constant 0 : i32
    %c0_i32_1 = arith.constant 0 : i32
    return %arg0, %c0_i32, %c0_i32_0 : i32, i32, i32
  }
}

</mosaic_0001>

<llo_original>
// kernel: tpu_custom_call.1
$region0: #{tpu_custom_call.1}
  #allocation0 [shape = 'u32[]', space=smem, size = 0x4, offset = 0x4, fixed_abs, tag = 'smem constant byte address 0x4 - core index']
  #allocation1 [shape = 'u32[144,128]{1,0:T(1,128)}', space=vmem, size = 0x12000, scoped, tag = 'internal scratch']
  %s0 = inlined_call_operand.hbm [shape: f32[8,32], index: 0, kind: input, shape index: {}]
  %s1 = inlined_call_operand.hbm [shape: f32[8,32], index: 1, kind: input, shape index: {}]
  %s2 = inlined_call_operand.hbm [shape: f32[8,32], index: 2, kind: input, shape index: {}]
  %s3 = inlined_call_operand.hbm [shape: f32[1,8,128], index: 3, kind: output, shape index: {}]
  %s4 = sld [smem:[#allocation0]]
  $region38: #{tpu_custom_call.1} parent=0
    _
  %s6 = ssub.s32 1, %s4
  %s7 = scalar_select 0, %s6, %s4
  $region1: #{tpu_custom_call.1} parent=0
    #allocation2 [shape = 'u8[4096]{0}', space=vmem, size = 0x1000, scoped, tag = 'input window, operand 0, single buffered']
    #allocation3 [shape = 's32[1]{0}', space=sflag, size = 0x4, scoped, tag = 'scoped memory for tpu_custom_call.1']
    #allocation4 [shape = 's32[1]{0}', space=sflag, size = 0x4, scoped, tag = 'scoped memory for tpu_custom_call.1']
    #allocation5 [shape = 'u8[4096]{0}', space=vmem, size = 0x1000, scoped, tag = 'input window, operand 1, single buffered']
    #allocation6 [shape = 's32[1]{0}', space=sflag, size = 0x4, scoped, tag = 'scoped memory for tpu_custom_call.1']
    #allocation7 [shape = 'u8[4096]{0}', space=vmem, size = 0x1000, scoped, tag = 'input window, operand 2, single buffered']
    #allocation8 [shape = 'u8[4096]{0}', space=vmem, size = 0x1000, scoped, tag = 'output window, operand 0, single buffered']
    %8 = vsyncpa [#allocation3], 0
    %9 = vsyncpa [#allocation6], 0
    %10 = vsyncpa [#allocation4], 0
    // Predicated region
    $region2: #{tpu_custom_call.1} parent=1 // pred_check
      _
    $region3: #{tpu_custom_call.1} parent=1 // pred_check_branch
      %12 = sbr.rel (0) target = $region5
    $region4: #{tpu_custom_call.1} parent=1 // pred_region
      %s13 = sadd.s32 0, 0
      %p14 = scmp.lt.s32.totalorder %s13, 0
      %s15 = scalar_select %p14, %s13, 0
      %s17 = ssub.s32 128, 128
      %18 = vsyncadd [#allocation3], %s17
      %s19 = smul.addr %s15, 128
      %s20 = scalar_lea.hbm %s0, %s19
      %s22 = sshll.u32 [#allocation2], 4
      %s23 = int_to_ptr.vmem [resolvable:$true] %s22
      %25 = dma.hbm_to_vmem [thread:$0]  %s20, 128, %s23, [#allocation3]
    $region5: #{tpu_custom_call.1} parent=1 // pred_fallthru
      _
    // Predicated region
    $region6: #{tpu_custom_call.1} parent=1 // pred_check
      _
    $region7: #{tpu_custom_call.1} parent=1 // pred_check_branch
      %27 = sbr.rel (0) target = $region9
    $region8: #{tpu_custom_call.1} parent=1 // pred_region
      %s28 = sadd.s32 0, 0
      %p29 = scmp.lt.s32.totalorder %s28, 0
      %s30 = scalar_select %p29, %s28, 0
      %s32 = ssub.s32 128, 128
      %33 = vsyncadd [#allocation6], %s32
      %s34 = smul.addr %s30, 128
      %s35 = scalar_lea.hbm %s1, %s34
      %s37 = sshll.u32 [#allocation5], 4
      %s38 = int_to_ptr.vmem [resolvable:$true] %s37
      %40 = dma.hbm_to_vmem [thread:$0]  %s35, 128, %s38, [#allocation6]
    $region9: #{tpu_custom_call.1} parent=1 // pred_fallthru
      _
    // Predicated region
    $region10: #{tpu_custom_call.1} parent=1 // pred_check
      _
    $region11: #{tpu_custom_call.1} parent=1 // pred_check_branch
      %42 = sbr.rel (0) target = $region13
    $region12: #{tpu_custom_call.1} parent=1 // pred_region
      %s43 = sadd.s32 0, 0
      %p44 = scmp.lt.s32.totalorder %s43, 0
      %s45 = scalar_select %p44, %s43, 0
      %s47 = ssub.s32 128, 128
      %48 = vsyncadd [#allocation6], %s47
      %s49 = smul.addr %s45, 128
      %s50 = scalar_lea.hbm %s2, %s49
      %s52 = sshll.u32 [#allocation7], 4
      %s53 = int_to_ptr.vmem [resolvable:$true] %s52
      %55 = dma.hbm_to_vmem [thread:$0]  %s50, 128, %s53, [#allocation6]
    $region13: #{tpu_custom_call.1} parent=1 // pred_fallthru
      _
    // Predicated region
    $region14: #{tpu_custom_call.1} parent=1 // pred_check
      _
    $region15: #{tpu_custom_call.1} parent=1 // pred_check_branch
      %57 = sbr.rel (0) target = $region17
    $region16: #{tpu_custom_call.1} parent=1 // pred_region
      %58 = dma.done [#allocation3], 128
    $region17: #{tpu_custom_call.1} parent=1 // pred_fallthru
      _
    // Predicated region
    $region18: #{tpu_custom_call.1} parent=1 // pred_check
      _
    $region19: #{tpu_custom_call.1} parent=1 // pred_check_branch
      %60 = sbr.rel (0) target = $region21
    $region20: #{tpu_custom_call.1} parent=1 // pred_region
      %61 = dma.done [#allocation6], 128
    $region21: #{tpu_custom_call.1} parent=1 // pred_fallthru
      _
    // Predicated region
    $region22: #{tpu_custom_call.1} parent=1 // pred_check
      _
    $region23: #{tpu_custom_call.1} parent=1 // pred_check_branch
      %63 = sbr.rel (0) target = $region25
    $region24: #{tpu_custom_call.1} parent=1 // pred_region
      %64 = dma.done [#allocation6], 128
    $region25: #{tpu_custom_call.1} parent=1 // pred_fallthru
      _
    %s65 = sadd.s32 0, 0
    %p66 = scmp.lt.s32.totalorder %s65, 0
    %s67 = scalar_select %p66, %s65, 0
    %s68 = sadd.s32 0, 0
    %p69 = scmp.lt.s32.totalorder %s68, 0
    %s70 = scalar_select %p69, %s68, 0
    %s71 = sadd.s32 0, 0
    %p72 = scmp.lt.s32.totalorder %s71, 0
    %s73 = scalar_select %p72, %s71, 0
    %p74 = scmp.eq.s32.totalorder 0, 0
    // Predicated region
    $region26: #{tpu_custom_call.1} parent=1 // pred_check
      %p75 = pneg %p74
    $region27: #{tpu_custom_call.1} parent=1 // pred_check_branch
      %77 = sbr.rel (%p75) target = $region29
    $region28: #{tpu_custom_call.1} parent=1 // pred_region
      %78 = vst [vmem:[#allocation8] sm:$0xff] 0.0
    $region29: #{tpu_custom_call.1} parent=1 // pred_fallthru
      _
    %v79 = vld [vmem:[#allocation7] sm:$0xff]
    %v80 = vld [vmem:[#allocation2] sm:$0xff]
    %v81 = vsub.f32 %v79, %v80
    %v82 = vld [vmem:[#allocation5] sm:$0xff]
    %v83 = vsub.f32 %v79, %v82
    %v84 = vmul.f32 %v81, %v81
    %vm85 = vcmask 261120
    %v86 = vsel %vm85, %v84, 0.0
    %87 = vadd.xlane.f32.xlu0 %v86
    %v88 = vpop.xlane.xlu0 %87
    %v89 = vmul.f32 %v83, %v83
    %v90 = vsel %vm85, %v89, 0.0
    %91 = vadd.xlane.f32.xlu0 %v90
    %v92 = vpop.xlane.xlu0 %91
    %v93 = vmax.f32 %v88, %v92
    %s94 = sadd.s32 0, 0
    %s95 = smul.u32 %s94, 8
    %v96 = vlaneseq
    %v97 = vshrl.u32 %v96, 7
    %v98 = vstv %s95
    %v99 = vadd.s32 %v98, %v97
    %vm100 = vcmp.lt.s32.totalorder %v99, 8
    %v101 = vsel %vm100, %v93, 0.0
    %v102 = vrot.slane %v101, 4
    %v103 = vadd.f32 %v101, %v102
    %v104 = vrot.slane %v103, 2
    %v105 = vadd.f32 %v103, %v104
    %v106 = vrot.slane %v105, 1
    %v107 = vadd.f32 %v105, %v106
    %v108 = vld [vmem:[#allocation8] sm:$0xff]
    %v109 = vadd.f32 %v108, %v107
    %110 = vst [vmem:[#allocation8] sm:$0xff] %v109
    // Predicated region
    $region30: #{tpu_custom_call.1} parent=1 // pred_check
      _
    $region31: #{tpu_custom_call.1} parent=1 // pred_check_branch
      %112 = sbr.rel (0) target = $region33
    $region32: #{tpu_custom_call.1} parent=1 // pred_region
      %s114 = ssub.s32 128, 128
      %115 = vsyncadd [#allocation4], %s114
      %s117 = sshll.u32 [#allocation8], 4
      %s118 = int_to_ptr.vmem [resolvable:$true] %s117
      %120 = dma.vmem_to_hbm [thread:$0]  %s118, 128, %s3, [#allocation4]
    $region33: #{tpu_custom_call.1} parent=1 // pred_fallthru
      _
    // Predicated region
    $region34: #{tpu_custom_call.1} parent=1 // pred_check
      _
    $region35: #{tpu_custom_call.1} parent=1 // pred_check_branch
      %122 = sbr.rel (0) target = $region37
    $region36: #{tpu_custom_call.1} parent=1 // pred_region
      %123 = dma.done [#allocation4], 128
    $region37: #{tpu_custom_call.1} parent=1 // pred_fallthru
      _
    %124 = vsyncpa [#allocation3], 1
    %125 = vsyncpa [#allocation6], 1
    %126 = vsyncpa [#allocation4], 1

</llo_original>
